<compile_context>
chip_gen: v7x
topology: tpu7x:2x2x1
jax: 0.10.0
libtpu: 0.0.40
codegen_flags: <defaults>
</compile_context>

<pallas_src>
import math

import jax
import jax.numpy as jnp
from jax.experimental import pallas as pl
from jax.experimental.pallas import tpu as pltpu


# ---------------------------------------------------------------------------
# Kernel
# ---------------------------------------------------------------------------
def _pooling_kernel(h_ref, logm_ref, pwt_ref, pb_ref, w1_ref, b1_ref,
                    w2_ref, b2_ref, out_ref, m_sc, den_sc, acc_sc):
    # h_ref:    (TB, Sc, Tp)    token-embedding tile (native dtype)
    # logm_ref: (TB, Sc)        log(attention_mask) chunk, f32
    # pwt_ref:  (Tp, HDp)       fused projection weights (col block i = P_i^T)
    # pb_ref:   (1, HDp)        fused projection bias (f32)
    # w1_ref:   (HDp, HHdp)     block-diagonal W1^T (all heads)
    # b1_ref:   (1, HHdp)       concatenated W1 bias (f32)
    # w2_ref:   (HHdp, HDp)     block-diagonal W2^T (all heads)
    # b2_ref:   (1, HDp)        concatenated W2 bias (f32)
    # out_ref:  (TB, HDp)       lane-dense pooled output (torch.cat head order)
    # m_sc/den_sc/acc_sc: (TB, HDp) f32 online-softmax accumulators.
    TB, Sc, Tp = h_ref.shape
    HDp = pwt_ref.shape[1]
    mm_dtype = h_ref.dtype
    M = TB * Sc
    ks = pl.program_id(1)

    @pl.when(ks == 0)
    def _init():
        # Finite sentinel (not -inf) so a fully masked *chunk* never produces
        # inf - inf = NaN in the online rescaling; fully masked *rows* still
        # end as 0/0 = NaN, matching the PyTorch reference.
        m_sc[...] = jnp.full_like(m_sc, -1e30)
        den_sc[...] = jnp.zeros_like(den_sc)
        acc_sc[...] = jnp.zeros_like(acc_sc)

    # Fused projection for all heads: one lane-dense (M, Tp) @ (Tp, HDp) matmul.
    X = h_ref[...].reshape(M, Tp)                               # free (Tp % 128 == 0)
    Hi = jnp.dot(X, pwt_ref[...],
                 preferred_element_type=jnp.float32) + pb_ref[...]        # (M, HDp) f32

    # Per-head attention MLP fused into two block-diagonal lane-dense matmuls.
    A = jnp.dot(Hi.astype(mm_dtype), w1_ref[...],
                preferred_element_type=jnp.float32) + b1_ref[...]         # (M, HHdp)
    A = jnp.maximum(A, 0.0)
    logits = jnp.dot(A.astype(mm_dtype), w2_ref[...],
                     preferred_element_type=jnp.float32) + b2_ref[...]    # (M, HDp)

    # Online masked softmax over the sequence axis + weighted sum of Hi.
    logits = logits.reshape(TB, Sc, HDp) + logm_ref[...][:, :, None]
    m_prev = m_sc[...]
    m_new = jnp.maximum(m_prev, jnp.max(logits, axis=1))        # (TB, HDp)
    alpha = jnp.exp(m_prev - m_new)
    e = jnp.exp(logits - m_new[:, None, :])                     # logits dead after this
    den_sc[...] = alpha * den_sc[...] + jnp.sum(e, axis=1)
    acc_sc[...] = alpha * acc_sc[...] + jnp.sum(Hi.reshape(TB, Sc, HDp) * e, axis=1)
    m_sc[...] = m_new

    @pl.when(ks == pl.num_programs(1) - 1)
    def _finalize():
        # TODO(synk): an all-zero attention-mask row yields NaN (0/0), exactly
        # like the reference PyTorch module.
        out_ref[...] = (acc_sc[...] / den_sc[...]).astype(out_ref.dtype)


# ---------------------------------------------------------------------------
# Tiling heuristics
# ---------------------------------------------------------------------------
def _round_up(x, m):
    return ((x + m - 1) // m) * m


def _vmem_footprint(tb, sc, tp, hdp, hhdp, emb_bytes, weight_bytes):
    streamed = 2 * tb * sc * (tp * emb_bytes + 4)     # emb tile + log-mask (double-buffered)
    inter = 4 * tb * sc * (3 * hdp + hhdp)            # Hi, logits/e, Hi*e, relu(A) in f32
    accum = 4 * tb * hdp * 3 + 2 * 4 * tb * hdp       # m/den/acc scratch + double-buffered out
    return streamed + inter + accum + 2 * weight_bytes  # constant weight blocks (x2 buffers)


def _pick_tiles(B, S, tp, hdp, hhdp, emb_bytes, vmem_limit_bytes):
    """Choose (batch_tile, seq_chunk).

    * batch_tile divides B and is a multiple of 8 (or == B) -> (8,128) rule.
    * seq_chunk is S (no chunking) or a multiple of 128 (lane-aligned log-mask
      block); chunking bounds VMEM independently of S (matters on v7x 64 MiB).
    * Prefer >= 4 batch grid steps (pipelining + megacore); when nothing fits,
      fall back to the SMALLEST legal tile (never the whole batch).
    """
    weight_bytes = ((tp * hdp + hdp * hhdp + hhdp * hdp) * emb_bytes
                    + (2 * hdp + hhdp) * 4)
    budget = int(vmem_limit_bytes * 0.85)

    legal_tbs = [d for d in range(1, B + 1)
                 if B % d == 0 and (d == B or d % 8 == 0)]
    tb_min = min(legal_tbs)

    def fits(tb, sc):
        return _vmem_footprint(tb, sc, tp, hdp, hhdp, emb_bytes,
                               weight_bytes) <= budget

    # Sequence chunk.
    sc = S
    if not fits(tb_min, S) and S > 128:
        sp = _round_up(S, 128)
        sc = 128
        c = sp
        while c >= 128:
            if sp % c == 0 and fits(tb_min, c):
                sc = c
                break
            c -= 128

    # Batch tile.
    fitting = [d for d in legal_tbs if fits(d, sc)]
    if not fitting:
        return tb_min, sc
    for min_steps in (4, 2, 1):
        cand = [d for d in fitting if B // d >= min_steps]
        if cand:
            return max(cand), sc
    return tb_min, sc


def _block_diag(blocks):
    h = len(blocks)
    r, c = blocks[0].shape
    out = jnp.zeros((h * r, h * c), blocks[0].dtype)
    for i, b in enumerate(blocks):
        out = out.at[i * r:(i + 1) * r, i * c:(i + 1) * c].set(b)
    return out


# ---------------------------------------------------------------------------
# Wrapper
# ---------------------------------------------------------------------------
def multihead_generalized_pooling_additive(token_embeddings, attention_mask,
                                           P_w, P_b, W1_w, W1_b, W2_w, W2_b,
                                           *, vmem_limit_bytes=None,
                                           batch_tile=None, seq_chunk=None):
    """Pallas implementation of MultiHeadGeneralizedPooling.forward_additive.

    token_embeddings: (B, S, token_dim)   (f32 or bf16; used natively on the MXU)
    attention_mask:   (B, S) float/int 0-1 mask
    P_w:  (H, D, T)   P_b:  (H, 1, D)
    W1_w: (H, Hd, D)  W1_b: (H, 1, Hd)
    W2_w: (H, D, Hd)  W2_b: (H, 1, D)
    returns: (B, H * D) sentence embedding (f32), torch.cat head order.
    """
    B, S, T = token_embeddings.shape
    H, D, _ = P_w.shape
    Hd = W1_w.shape[1]
    HD = H * D
    HHd = H * Hd
    emb_dtype = token_embeddings.dtype
    emb_bytes = jnp.dtype(emb_dtype).itemsize

    # Generation-aware VMEM budget: ~78% of per-core VMEM capped at 100 MiB
    # (-> ~50 MiB on v7x's 64 MiB, ~100 MiB on v5e/v6e's 128 MiB).
    if vmem_limit_bytes is None:
        try:
            cap = pltpu.get_tpu_info().vmem_capacity_bytes
        except Exception:
            cap = 128 * 1024 * 1024
        vmem_limit_bytes = min(int(cap * 0.78), 100 * 1024 * 1024)

    # Lane-align T, H*D and H*Hd to multiples of 128 (free reshapes, unmasked
    # lane-dense output stores).  Real configs (768/3072) are already aligned.
    Tp = _round_up(T, 128)
    HDp = _round_up(HD, 128)
    HHdp = _round_up(HHd, 128)

    # Fused / block-diagonal weights (tiny, built once per call).
    pwt = jnp.transpose(P_w, (2, 0, 1)).reshape(T, HD)                 # (T, HD)
    pb = P_b.reshape(1, HD)
    w1bd = _block_diag([W1_w[i].T for i in range(H)])                  # (HD, HHd)
    b1 = W1_b.reshape(1, HHd)
    w2bd = _block_diag([W2_w[i].T for i in range(H)])                  # (HHd, HD)
    b2 = W2_b.reshape(1, HD)

    def _pad2(w, r, c):
        return jnp.pad(w, ((0, r - w.shape[0]), (0, c - w.shape[1])))

    pwt = _pad2(pwt, Tp, HDp).astype(emb_dtype)
    pb = _pad2(pb, 1, HDp).astype(jnp.float32)
    w1bd = _pad2(w1bd, HDp, HHdp).astype(emb_dtype)
    b1 = _pad2(b1, 1, HHdp).astype(jnp.float32)
    w2bd = _pad2(w2bd, HHdp, HDp).astype(emb_dtype)
    b2 = _pad2(b2, 1, HDp).astype(jnp.float32)

    # Tile selection (overridable for tests / tuning).
    TB, Sc = _pick_tiles(B, S, Tp, HDp, HHdp, emb_bytes, vmem_limit_bytes)
    if batch_tile is not None:
        TB = batch_tile
    if seq_chunk is not None:
        Sc = seq_chunk
    S_pad = _round_up(S, Sc)

    x = token_embeddings
    mask = attention_mask.astype(jnp.float32)
    if Tp != T:
        x = jnp.pad(x, ((0, 0), (0, 0), (0, Tp - T)))
    if S_pad != S:
        # Padded positions get mask=0 -> log = -inf -> softmax weight exactly 0.
        x = jnp.pad(x, ((0, 0), (0, S_pad - S), (0, 0)))
        mask = jnp.pad(mask, ((0, 0), (0, S_pad - S)))
    logm = jnp.log(mask)                                               # (B, S_pad) f32

    grid = (B // TB, S_pad // Sc)

    weight_bytes = ((Tp * HDp + HDp * HHdp + HHdp * HDp) * emb_bytes
                    + (2 * HDp + HHdp) * 4)
    cost = pl.CostEstimate(
        flops=2 * B * S_pad * (Tp * HDp + HDp * HHdp + HHdp * HDp),
        transcendentals=B * S_pad * HDp + B * grid[1] * HDp,
        bytes_accessed=(B * S_pad * Tp * emb_bytes + B * S_pad * 4
                        + weight_bytes + B * HDp * 4))

    out = pl.pallas_call(
        _pooling_kernel,
        out_shape=jax.ShapeDtypeStruct((B, HDp), jnp.float32),
        grid_spec=pltpu.PrefetchScalarGridSpec(
            num_scalar_prefetch=0,
            grid=grid,
            in_specs=[
                pl.BlockSpec((TB, Sc, Tp), lambda b, s: (b, s, 0)),   # embeddings tile
                pl.BlockSpec((TB, Sc), lambda b, s: (b, s)),          # log-mask tile
                pl.BlockSpec((Tp, HDp), lambda b, s: (0, 0)),         # fused P^T (resident)
                pl.BlockSpec((1, HDp), lambda b, s: (0, 0)),
                pl.BlockSpec((HDp, HHdp), lambda b, s: (0, 0)),       # block-diag W1^T
                pl.BlockSpec((1, HHdp), lambda b, s: (0, 0)),
                pl.BlockSpec((HHdp, HDp), lambda b, s: (0, 0)),       # block-diag W2^T
                pl.BlockSpec((1, HDp), lambda b, s: (0, 0)),
            ],
            out_specs=pl.BlockSpec((TB, HDp), lambda b, s: (b, 0)),   # lane-dense output
            scratch_shapes=[pltpu.VMEM((TB, HDp), jnp.float32),       # m
                            pltpu.VMEM((TB, HDp), jnp.float32),       # denom
                            pltpu.VMEM((TB, HDp), jnp.float32)],      # weighted acc
        ),
        compiler_params=pltpu.CompilerParams(
            dimension_semantics=("parallel", "arbitrary"),
            vmem_limit_bytes=vmem_limit_bytes),
        cost_estimate=cost,
    )(x, logm, pwt, pb, w1bd, b1, w2bd, b2)

    return out[:, :HD] if HDp != HD else out


# ---------------------------------------------------------------------------
# Pure-JAX reference & self-test
# ---------------------------------------------------------------------------
def _reference(token_embeddings, attention_mask, P_w, P_b, W1_w, W1_b, W2_w, W2_b):
    """Pure-JAX port of forward_additive for correctness checking."""
    logm = jnp.log(attention_mask.astype(jnp.float32))[..., None]   # (B, S, 1)
    x = token_embeddings.astype(jnp.float32)
    outs = []
    for i in range(P_w.shape[0]):
        Hi = x @ P_w[i].T + P_b[i]                                  # (B, S, D)
        A = jax.nn.relu(Hi @ W1_w[i].T + W1_b[i])                   # (B, S, Hd)
        A = A @ W2_w[i].T + W2_b[i]                                 # (B, S, D)
        A = jax.nn.softmax(A + logm, axis=1)
        outs.append(jnp.sum(Hi * A, axis=1))                        # (B, D)
    return jnp.concatenate(outs, axis=-1)


def _kaiming_uniform(key, shape, fan_in):
    # nn.init.kaiming_uniform_(w, a=0): bound = sqrt(2) * sqrt(3 / fan_in)
    bound = math.sqrt(2.0) * math.sqrt(3.0 / fan_in)
    return jax.random.uniform(key, shape, jnp.float32, -bound, bound)


if __name__ == "__main__":
    # Module-consistent sizes: token_dim == sentence_dim, head_dim = sent/heads,
    # hidden_dim = 4 * head_dim (as in __init__).
    token_dim = 32
    sentence_dim = 32
    num_heads = 4
    head_dim = sentence_dim // num_heads        # 8
    hidden_dim = 4 * head_dim                   # 32

    key = jax.random.PRNGKey(0)
    keys = jax.random.split(key, 8)

    # Deterministic "initialize=2" (kaiming_uniform weights, zero biases), heads stacked.
    P_w = _kaiming_uniform(keys[1], (num_heads, head_dim, token_dim), token_dim)
    P_b = jnp.zeros((num_heads, 1, head_dim), jnp.float32)
    W1_w = _kaiming_uniform(keys[2], (num_heads, hidden_dim, head_dim), head_dim)
    W1_b = jnp.zeros((num_heads, 1, hidden_dim), jnp.float32)
    W2_w = _kaiming_uniform(keys[3], (num_heads, head_dim, hidden_dim), hidden_dim)
    W2_b = jnp.zeros((num_heads, 1, head_dim), jnp.float32)

    # ---- Test 1: small shapes, tight tolerance ----
    B, S = 2, 8
    token_embeddings = jax.random.normal(keys[0], (B, S, token_dim), jnp.float32)
    attention_mask = jnp.array([[1] * S, [1] * (S - 3) + [0] * 3], dtype=jnp.float32)

    pooled = multihead_generalized_pooling_additive(
        token_embeddings, attention_mask, P_w, P_b, W1_w, W1_b, W2_w, W2_b)
    pooled = jax.block_until_ready(pooled)
    assert pooled.shape == (B, sentence_dim), pooled.shape

    ref = _reference(token_embeddings, attention_mask,
                     P_w, P_b, W1_w, W1_b, W2_w, W2_b)
    assert jnp.allclose(pooled, ref, atol=2e-5, rtol=2e-5), (
        float(jnp.max(jnp.abs(pooled - ref))))

    # ---- Test 2: multi-step batch grid + forced S-chunking (online softmax) ----
    B2, S2 = 16, 256
    x2 = jax.random.normal(keys[4], (B2, S2, token_dim), jnp.float32)
    lengths = jnp.array([256, 5, 200, 256, 1, 128, 64, 250,
                         256, 13, 99, 256, 7, 180, 256, 32])
    mask2 = (jnp.arange(S2)[None, :] < lengths[:, None]).astype(jnp.float32)
    # Row 3: left-padded (first 150 positions masked) to exercise the
    # fully-masked-leading-chunk path of the online softmax.
    mask2 = mask2.at[3].set((jnp.arange(S2) >= 150).astype(jnp.float32))

    pooled2 = multihead_generalized_pooling_additive(
        x2, mask2, P_w, P_b, W1_w, W1_b, W2_w, W2_b,
        batch_tile=8, seq_chunk=128)
    pooled2 = jax.block_until_ready(pooled2)
    assert pooled2.shape == (B2, sentence_dim), pooled2.shape

    ref2 = _reference(x2, mask2, P_w, P_b, W1_w, W1_b, W2_w, W2_b)
    assert jnp.allclose(pooled2, ref2, atol=1e-3, rtol=1e-3), (
        float(jnp.max(jnp.abs(pooled2 - ref2))))

    print("KERNEL_OK")
</pallas_src>

<mosaic_0001>
module attributes {stable_mosaic.version = 11 : i64} {
  func.func @_pooling_kernel(%arg0: i32, %arg1: i32, %arg2: memref<2x8x128xf32, #tpu.memory_space<vmem>>, %arg3: memref<2x8xf32, #tpu.memory_space<vmem>>, %arg4: memref<128x128xf32, #tpu.memory_space<vmem>>, %arg5: memref<1x128xf32, #tpu.memory_space<vmem>>, %arg6: memref<128x128xf32, #tpu.memory_space<vmem>>, %arg7: memref<1x128xf32, #tpu.memory_space<vmem>>, %arg8: memref<128x128xf32, #tpu.memory_space<vmem>>, %arg9: memref<1x128xf32, #tpu.memory_space<vmem>>, %arg10: memref<2x128xf32, #tpu.memory_space<vmem>>, %arg11: memref<2x128xf32, #tpu.memory_space<vmem>>, %arg12: memref<2x128xf32, #tpu.memory_space<vmem>>, %arg13: memref<2x128xf32, #tpu.memory_space<vmem>>) attributes {dimension_semantics = [#tpu.dimension_semantics<parallel>, #tpu.dimension_semantics<arbitrary>], iteration_bounds = array<i64: 1, 1>, scalar_prefetch = 0 : i64, scratch_operands = 3 : i64, tpu.core_type = #tpu.core_type<tc>, window_params = [{transform_indices = @transform_0, window_bounds = array<i64: 2, 8, 128>}, {transform_indices = @transform_1, window_bounds = array<i64: 2, 8>}, {pipeline_mode = #tpu.pipeline_mode<synchronous>, transform_indices = @transform_2, window_bounds = array<i64: 128, 128>}, {pipeline_mode = #tpu.pipeline_mode<synchronous>, transform_indices = @transform_3, window_bounds = array<i64: 1, 128>}, {pipeline_mode = #tpu.pipeline_mode<synchronous>, transform_indices = @transform_4, window_bounds = array<i64: 128, 128>}, {pipeline_mode = #tpu.pipeline_mode<synchronous>, transform_indices = @transform_5, window_bounds = array<i64: 1, 128>}, {pipeline_mode = #tpu.pipeline_mode<synchronous>, transform_indices = @transform_6, window_bounds = array<i64: 128, 128>}, {pipeline_mode = #tpu.pipeline_mode<synchronous>, transform_indices = @transform_7, window_bounds = array<i64: 1, 128>}, {transform_indices = @transform_8, window_bounds = array<i64: 2, 128>}]} {
    %c0_i32 = arith.constant 0 : i32
    %0 = arith.cmpi eq, %arg1, %c0_i32 : i32
    %1 = arith.extui %0 : i1 to i32
    %c0_i32_0 = arith.constant 0 : i32
    %2 = arith.cmpi ne, %1, %c0_i32_0 : i32
    scf.if %2 {
      %cst_37 = arith.constant -1.000000e+30 : f32
      %52 = vector.broadcast %cst_37 : f32 to vector<2x128xf32>
      %c0_38 = arith.constant 0 : index
      %c0_39 = arith.constant 0 : index
      %53 = vector.load %arg11[%c0_38, %c0_39] : memref<2x128xf32, #tpu.memory_space<vmem>>, vector<2x128xf32>
      tpu.vector_store %arg11[%c0_38, %c0_39], %52 {strides = array<i32>} : memref<2x128xf32, #tpu.memory_space<vmem>>, vector<2x128xf32>,
      %cst_40 = arith.constant 0.000000e+00 : f32
      %54 = vector.broadcast %cst_40 : f32 to vector<2x128xf32>
      %c0_41 = arith.constant 0 : index
      %c0_42 = arith.constant 0 : index
      %55 = vector.load %arg12[%c0_41, %c0_42] : memref<2x128xf32, #tpu.memory_space<vmem>>, vector<2x128xf32>
      tpu.vector_store %arg12[%c0_41, %c0_42], %54 {strides = array<i32>} : memref<2x128xf32, #tpu.memory_space<vmem>>, vector<2x128xf32>,
      %cst_43 = arith.constant 0.000000e+00 : f32
      %56 = vector.broadcast %cst_43 : f32 to vector<2x128xf32>
      %c0_44 = arith.constant 0 : index
      %c0_45 = arith.constant 0 : index
      %57 = vector.load %arg13[%c0_44, %c0_45] : memref<2x128xf32, #tpu.memory_space<vmem>>, vector<2x128xf32>
      tpu.vector_store %arg13[%c0_44, %c0_45], %56 {strides = array<i32>} : memref<2x128xf32, #tpu.memory_space<vmem>>, vector<2x128xf32>,
    } else {
    }
    %c0 = arith.constant 0 : index
    %c0_1 = arith.constant 0 : index
    %c0_2 = arith.constant 0 : index
    %3 = vector.load %arg2[%c0, %c0_1, %c0_2] : memref<2x8x128xf32, #tpu.memory_space<vmem>>, vector<2x8x128xf32>
    %4 = vector.shape_cast %3 : vector<2x8x128xf32> to vector<16x128xf32>
    %c0_3 = arith.constant 0 : index
    %c0_4 = arith.constant 0 : index
    %5 = vector.load %arg4[%c0_3, %c0_4] : memref<128x128xf32, #tpu.memory_space<vmem>>, vector<128x128xf32>
    %cst = arith.constant dense<0.000000e+00> : vector<16x128xf32>
    %6 = tpu.matmul %4, %5, %cst {dimension_numbers = #tpu.dot_dimension_numbers<[1], [0], [0], [1], [0, 0, 1, 1], [], []>} : vector<16x128xf32>, vector<128x128xf32>, vector<16x128xf32> -> vector<16x128xf32>
    %c0_5 = arith.constant 0 : index
    %c0_6 = arith.constant 0 : index
    %7 = vector.load %arg5[%c0_5, %c0_6] : memref<1x128xf32, #tpu.memory_space<vmem>>, vector<1x128xf32>
    %8 = vector.broadcast %7 : vector<1x128xf32> to vector<16x128xf32>
    %9 = arith.addf %6, %8 : vector<16x128xf32>
    %c0_7 = arith.constant 0 : index
    %c0_8 = arith.constant 0 : index
    %10 = vector.load %arg6[%c0_7, %c0_8] : memref<128x128xf32, #tpu.memory_space<vmem>>, vector<128x128xf32>
    %cst_9 = arith.constant dense<0.000000e+00> : vector<16x128xf32>
    %11 = tpu.matmul %9, %10, %cst_9 {dimension_numbers = #tpu.dot_dimension_numbers<[1], [0], [0], [1], [0, 0, 1, 1], [], []>} : vector<16x128xf32>, vector<128x128xf32>, vector<16x128xf32> -> vector<16x128xf32>
    %c0_10 = arith.constant 0 : index
    %c0_11 = arith.constant 0 : index
    %12 = vector.load %arg7[%c0_10, %c0_11] : memref<1x128xf32, #tpu.memory_space<vmem>>, vector<1x128xf32>
    %13 = vector.broadcast %12 : vector<1x128xf32> to vector<16x128xf32>
    %14 = arith.addf %11, %13 : vector<16x128xf32>
    %cst_12 = arith.constant 0.000000e+00 : f32
    %15 = vector.broadcast %cst_12 : f32 to vector<16x128xf32>
    %16 = arith.maximumf %14, %15 : vector<16x128xf32>
    %c0_13 = arith.constant 0 : index
    %c0_14 = arith.constant 0 : index
    %17 = vector.load %arg8[%c0_13, %c0_14] : memref<128x128xf32, #tpu.memory_space<vmem>>, vector<128x128xf32>
    %cst_15 = arith.constant dense<0.000000e+00> : vector<16x128xf32>
    %18 = tpu.matmul %16, %17, %cst_15 {dimension_numbers = #tpu.dot_dimension_numbers<[1], [0], [0], [1], [0, 0, 1, 1], [], []>} : vector<16x128xf32>, vector<128x128xf32>, vector<16x128xf32> -> vector<16x128xf32>
    %c0_16 = arith.constant 0 : index
    %c0_17 = arith.constant 0 : index
    %19 = vector.load %arg9[%c0_16, %c0_17] : memref<1x128xf32, #tpu.memory_space<vmem>>, vector<1x128xf32>
    %20 = vector.broadcast %19 : vector<1x128xf32> to vector<16x128xf32>
    %21 = arith.addf %18, %20 : vector<16x128xf32>
    %22 = vector.shape_cast %21 : vector<16x128xf32> to vector<2x8x128xf32>
    %c0_18 = arith.constant 0 : index
    %c0_19 = arith.constant 0 : index
    %23 = vector.load %arg3[%c0_18, %c0_19] : memref<2x8xf32, #tpu.memory_space<vmem>>, vector<2x8xf32>
    %24 = vector.shape_cast %23 : vector<2x8xf32> to vector<2x8x1xf32>
    %25 = vector.broadcast %24 : vector<2x8x1xf32> to vector<2x8x128xf32>
    %26 = arith.addf %22, %25 : vector<2x8x128xf32>
    %c0_20 = arith.constant 0 : index
    %c0_21 = arith.constant 0 : index
    %27 = vector.load %arg11[%c0_20, %c0_21] : memref<2x128xf32, #tpu.memory_space<vmem>>, vector<2x128xf32>
    %cst_22 = arith.constant dense<0xFF800000> : vector<2x128xf32>
    %28 = vector.multi_reduction <maximumf>, %26, %cst_22 [1] : vector<2x8x128xf32> to vector<2x128xf32>
    %29 = arith.maximumf %27, %28 : vector<2x128xf32>
    %30 = arith.subf %27, %29 : vector<2x128xf32>
    %31 = math.exp %30 : vector<2x128xf32>
    %32 = vector.shape_cast %29 : vector<2x128xf32> to vector<2x1x128xf32>
    %33 = vector.broadcast %32 : vector<2x1x128xf32> to vector<2x8x128xf32>
    %34 = arith.subf %26, %33 : vector<2x8x128xf32>
    %35 = math.exp %34 : vector<2x8x128xf32>
    %c0_23 = arith.constant 0 : index
    %c0_24 = arith.constant 0 : index
    %36 = vector.load %arg12[%c0_23, %c0_24] : memref<2x128xf32, #tpu.memory_space<vmem>>, vector<2x128xf32>
    %37 = arith.mulf %31, %36 : vector<2x128xf32>
    %cst_25 = arith.constant dense<0.000000e+00> : vector<2x128xf32>
    %38 = vector.multi_reduction <add>, %35, %cst_25 [1] : vector<2x8x128xf32> to vector<2x128xf32>
    %39 = arith.addf %37, %38 : vector<2x128xf32>
    %c0_26 = arith.constant 0 : index
    %c0_27 = arith.constant 0 : index
    %40 = vector.load %arg12[%c0_26, %c0_27] : memref<2x128xf32, #tpu.memory_space<vmem>>, vector<2x128xf32>
    tpu.vector_store %arg12[%c0_26, %c0_27], %39 {strides = array<i32>} : memref<2x128xf32, #tpu.memory_space<vmem>>, vector<2x128xf32>,
    %c0_28 = arith.constant 0 : index
    %c0_29 = arith.constant 0 : index
    %41 = vector.load %arg13[%c0_28, %c0_29] : memref<2x128xf32, #tpu.memory_space<vmem>>, vector<2x128xf32>
    %42 = arith.mulf %31, %41 : vector<2x128xf32>
    %43 = vector.shape_cast %9 : vector<16x128xf32> to vector<2x8x128xf32>
    %44 = arith.mulf %43, %35 : vector<2x8x128xf32>
    %cst_30 = arith.constant dense<0.000000e+00> : vector<2x128xf32>
    %45 = vector.multi_reduction <add>, %44, %cst_30 [1] : vector<2x8x128xf32> to vector<2x128xf32>
    %46 = arith.addf %42, %45 : vector<2x128xf32>
    %c0_31 = arith.constant 0 : index
    %c0_32 = arith.constant 0 : index
    %47 = vector.load %arg13[%c0_31, %c0_32] : memref<2x128xf32, #tpu.memory_space<vmem>>, vector<2x128xf32>
    tpu.vector_store %arg13[%c0_31, %c0_32], %46 {strides = array<i32>} : memref<2x128xf32, #tpu.memory_space<vmem>>, vector<2x128xf32>,
    %c0_33 = arith.constant 0 : index
    %c0_34 = arith.constant 0 : index
    %48 = vector.load %arg11[%c0_33, %c0_34] : memref<2x128xf32, #tpu.memory_space<vmem>>, vector<2x128xf32>
    tpu.vector_store %arg11[%c0_33, %c0_34], %29 {strides = array<i32>} : memref<2x128xf32, #tpu.memory_space<vmem>>, vector<2x128xf32>,
    %c0_i32_35 = arith.constant 0 : i32
    %49 = arith.cmpi eq, %arg1, %c0_i32_35 : i32
    %50 = arith.extui %49 : i1 to i32
    %c0_i32_36 = arith.constant 0 : i32
    %51 = arith.cmpi ne, %50, %c0_i32_36 : i32
    scf.if %51 {
      %c0_37 = arith.constant 0 : index
      %c0_38 = arith.constant 0 : index
      %52 = vector.load %arg13[%c0_37, %c0_38] : memref<2x128xf32, #tpu.memory_space<vmem>>, vector<2x128xf32>
      %c0_39 = arith.constant 0 : index
      %c0_40 = arith.constant 0 : index
      %53 = vector.load %arg12[%c0_39, %c0_40] : memref<2x128xf32, #tpu.memory_space<vmem>>, vector<2x128xf32>
      %54 = arith.divf %52, %53 : vector<2x128xf32>
      %c0_41 = arith.constant 0 : index
      %c0_42 = arith.constant 0 : index
      %55 = vector.load %arg10[%c0_41, %c0_42] : memref<2x128xf32, #tpu.memory_space<vmem>>, vector<2x128xf32>
      tpu.vector_store %arg10[%c0_41, %c0_42], %54 {strides = array<i32>} : memref<2x128xf32, #tpu.memory_space<vmem>>, vector<2x128xf32>,
    } else {
    }
    return
  }
  func.func @transform_0(%arg0: i32, %arg1: i32) -> (i32, i32, i32) {
    %c0_i32 = arith.constant 0 : i32
    %c0_i32_0 = arith.constant 0 : i32
    return %arg0, %arg1, %c0_i32 : i32, i32, i32
  }
  func.func @transform_1(%arg0: i32, %arg1: i32) -> (i32, i32) {
    %c0_i32 = arith.constant 0 : i32
    return %arg0, %arg1 : i32, i32
  }
  func.func @transform_2(%arg0: i32, %arg1: i32) -> (i32, i32) {
    %c0_i32 = arith.constant 0 : i32
    %c0_i32_0 = arith.constant 0 : i32
    %c0_i32_1 = arith.constant 0 : i32
    return %c0_i32, %c0_i32_0 : i32, i32
  }
  func.func @transform_3(%arg0: i32, %arg1: i32) -> (i32, i32) {
    %c0_i32 = arith.constant 0 : i32
    %c0_i32_0 = arith.constant 0 : i32
    %c0_i32_1 = arith.constant 0 : i32
    return %c0_i32, %c0_i32_0 : i32, i32
  }
  func.func @transform_4(%arg0: i32, %arg1: i32) -> (i32, i32) {
    %c0_i32 = arith.constant 0 : i32
    %c0_i32_0 = arith.constant 0 : i32
    %c0_i32_1 = arith.constant 0 : i32
    return %c0_i32, %c0_i32_0 : i32, i32
  }
  func.func @transform_5(%arg0: i32, %arg1: i32) -> (i32, i32) {
    %c0_i32 = arith.constant 0 : i32
    %c0_i32_0 = arith.constant 0 : i32
    %c0_i32_1 = arith.constant 0 : i32
    return %c0_i32, %c0_i32_0 : i32, i32
  }
  func.func @transform_6(%arg0: i32, %arg1: i32) -> (i32, i32) {
    %c0_i32 = arith.constant 0 : i32
    %c0_i32_0 = arith.constant 0 : i32
    %c0_i32_1 = arith.constant 0 : i32
    return %c0_i32, %c0_i32_0 : i32, i32
  }
  func.func @transform_7(%arg0: i32, %arg1: i32) -> (i32, i32) {
    %c0_i32 = arith.constant 0 : i32
    %c0_i32_0 = arith.constant 0 : i32
    %c0_i32_1 = arith.constant 0 : i32
    return %c0_i32, %c0_i32_0 : i32, i32
  }
  func.func @transform_8(%arg0: i32, %arg1: i32) -> (i32, i32) {
    %c0_i32 = arith.constant 0 : i32
    %c0_i32_0 = arith.constant 0 : i32
    return %arg0, %c0_i32 : i32, i32
  }
}

</mosaic_0001>

<llo_original>
// kernel: tpu_custom_call.1
$region0: #{tpu_custom_call.1}
  #allocation0 [shape = 'u32[]', space=smem, size = 0x4, offset = 0x4, fixed_abs, tag = 'smem constant byte address 0x4 - core index']
  #allocation1 [shape = 'u32[144,128]{1,0:T(1,128)}', space=vmem, size = 0x12000, scoped, tag = 'internal scratch']
  #allocation2 [shape = 'f32[2,128]{1,0:T(2,128)}', space=vmem, size = 0x400, scoped, tag = 'scratch operand']
  #allocation3 [shape = 'f32[2,128]{1,0:T(2,128)}', space=vmem, size = 0x400, scoped, tag = 'scratch operand']
  #allocation4 [shape = 'f32[2,128]{1,0:T(2,128)}', space=vmem, size = 0x400, scoped, tag = 'scratch operand']
  %s0 = inlined_call_operand.hbm [shape: f32[2,8,128], index: 0, kind: input, shape index: {}]
  %s1 = inlined_call_operand.hbm [shape: f32[2,8], index: 1, kind: input, shape index: {}]
  %s2 = inlined_call_operand.hbm [shape: f32[128,128], index: 2, kind: input, shape index: {}]
  %s3 = inlined_call_operand.hbm [shape: f32[1,128], index: 3, kind: input, shape index: {}]
  %s4 = inlined_call_operand.hbm [shape: f32[128,128], index: 4, kind: input, shape index: {}]
  %s5 = inlined_call_operand.hbm [shape: f32[1,128], index: 5, kind: input, shape index: {}]
  %s6 = inlined_call_operand.hbm [shape: f32[128,128], index: 6, kind: input, shape index: {}]
  %s7 = inlined_call_operand.hbm [shape: f32[1,128], index: 7, kind: input, shape index: {}]
  %s8 = inlined_call_operand.hbm [shape: f32[2,128], index: 8, kind: output, shape index: {}]
  %s9 = sld [smem:[#allocation0]]
  $region82: #{tpu_custom_call.1} parent=0
    _
  %s11 = ssub.s32 1, %s9
  %s12 = scalar_select 0, %s11, %s9
  $region1: #{tpu_custom_call.1} parent=0
    #allocation5 [shape = 'u8[8192]{0}', space=vmem, size = 0x2000, scoped, tag = 'input window, operand 0, single buffered']
    #allocation6 [shape = 's32[1]{0}', space=sflag, size = 0x4, scoped, tag = 'scoped memory for tpu_custom_call.1']
    #allocation7 [shape = 's32[1]{0}', space=sflag, size = 0x4, scoped, tag = 'scoped memory for tpu_custom_call.1']
    #allocation8 [shape = 'u8[1024]{0}', space=vmem, size = 0x400, scoped, tag = 'input window, operand 1, single buffered']
    #allocation9 [shape = 's32[1]{0}', space=sflag, size = 0x4, scoped, tag = 'scoped memory for tpu_custom_call.1']
    #allocation10 [shape = 'u8[65536]{0}', space=vmem, size = 0x10000, scoped, tag = 'input window, operand 2, single buffered']
    #allocation11 [shape = 'u8[512]{0}', space=vmem, size = 0x400, scoped, tag = 'input window, operand 3, single buffered']
    #allocation12 [shape = 's32[1]{0}', space=sflag, size = 0x4, scoped, tag = 'scoped memory for tpu_custom_call.1']
    #allocation13 [shape = 'u8[65536]{0}', space=vmem, size = 0x10000, scoped, tag = 'input window, operand 4, single buffered']
    #allocation14 [shape = 'u8[512]{0}', space=vmem, size = 0x400, scoped, tag = 'input window, operand 5, single buffered']
    #allocation15 [shape = 's32[1]{0}', space=sflag, size = 0x4, scoped, tag = 'scoped memory for tpu_custom_call.1']
    #allocation16 [shape = 'u8[65536]{0}', space=vmem, size = 0x10000, scoped, tag = 'input window, operand 6, single buffered']
    #allocation17 [shape = 'u8[512]{0}', space=vmem, size = 0x400, scoped, tag = 'input window, operand 7, single buffered']
    #allocation18 [shape = 's32[1]{0}', space=sflag, size = 0x4, scoped, tag = 'scoped memory for tpu_custom_call.1']
    #allocation19 [shape = 'u8[1024]{0}', space=vmem, size = 0x400, scoped, tag = 'output window, operand 0, single buffered']
    %13 = vsyncpa [#allocation6], 0
    %14 = vsyncpa [#allocation9], 0
    %15 = vsyncpa [#allocation12], 0
    %16 = vsyncpa [#allocation15], 0
    %17 = vsyncpa [#allocation18], 0
    %18 = vsyncpa [#allocation7], 0
    // Predicated region
    $region2: #{tpu_custom_call.1} parent=1 // pred_check
      _
    $region3: #{tpu_custom_call.1} parent=1 // pred_check_branch
      %20 = sbr.rel (0) target = $region5
    $region4: #{tpu_custom_call.1} parent=1 // pred_region
      %s22 = ssub.s32 256, 256
      %23 = vsyncadd [#allocation6], %s22
      %s24 = sshll.u32 [#allocation5], 4
      %s25 = int_to_ptr.vmem [resolvable:$true] %s24
      %30 = dma.hbm_to_vmem [thread:$0]  %s0, 256, %s25, [#allocation6], 128, 128, 8
    $region5: #{tpu_custom_call.1} parent=1 // pred_fallthru
      _
    // Predicated region
    $region6: #{tpu_custom_call.1} parent=1 // pred_check
      _
    $region7: #{tpu_custom_call.1} parent=1 // pred_check_branch
      %32 = sbr.rel (0) target = $region9
    $region8: #{tpu_custom_call.1} parent=1 // pred_region
      %s34 = ssub.s32 32, 32
      %35 = vsyncadd [#allocation9], %s34
      %s37 = sshll.u32 [#allocation8], 4
      %s38 = int_to_ptr.vmem [resolvable:$true] %s37
      %40 = dma.hbm_to_vmem [thread:$0]  %s1, 32, %s38, [#allocation9]
    $region9: #{tpu_custom_call.1} parent=1 // pred_fallthru
      _
    // Predicated region
    $region10: #{tpu_custom_call.1} parent=1 // pred_check
      _
    $region11: #{tpu_custom_call.1} parent=1 // pred_check_branch
      %42 = sbr.rel (0) target = $region13
    $region12: #{tpu_custom_call.1} parent=1 // pred_region
      %s44 = ssub.s32 2048, 2048
      %45 = vsyncadd [#allocation9], %s44
      %s46 = sshll.u32 [#allocation10], 4
      %s47 = int_to_ptr.vmem [resolvable:$true] %s46
      %52 = dma.hbm_to_vmem [thread:$0]  %s2, 2048, %s47, [#allocation9], 128, 128, 8
    $region13: #{tpu_custom_call.1} parent=1 // pred_fallthru
      _
    // Predicated region
    $region14: #{tpu_custom_call.1} parent=1 // pred_check
      _
    $region15: #{tpu_custom_call.1} parent=1 // pred_check_branch
      %54 = sbr.rel (0) target = $region17
    $region16: #{tpu_custom_call.1} parent=1 // pred_region
      %s56 = ssub.s32 16, 16
      %57 = vsyncadd [#allocation12], %s56
      %s59 = sshll.u32 [#allocation11], 4
      %s60 = int_to_ptr.vmem [resolvable:$true] %s59
      %62 = dma.hbm_to_vmem [thread:$0]  %s3, 16, %s60, [#allocation12]
    $region17: #{tpu_custom_call.1} parent=1 // pred_fallthru
      _
    // Predicated region
    $region18: #{tpu_custom_call.1} parent=1 // pred_check
      _
    $region19: #{tpu_custom_call.1} parent=1 // pred_check_branch
      %64 = sbr.rel (0) target = $region21
    $region20: #{tpu_custom_call.1} parent=1 // pred_region
      %s66 = ssub.s32 2048, 2048
      %67 = vsyncadd [#allocation12], %s66
      %s68 = sshll.u32 [#allocation13], 4
      %s69 = int_to_ptr.vmem [resolvable:$true] %s68
      %74 = dma.hbm_to_vmem [thread:$0]  %s4, 2048, %s69, [#allocation12], 128, 128, 8
    $region21: #{tpu_custom_call.1} parent=1 // pred_fallthru
      _
    // Predicated region
    $region22: #{tpu_custom_call.1} parent=1 // pred_check
      _
    $region23: #{tpu_custom_call.1} parent=1 // pred_check_branch
      %76 = sbr.rel (0) target = $region25
    $region24: #{tpu_custom_call.1} parent=1 // pred_region
      %s78 = ssub.s32 16, 16
      %79 = vsyncadd [#allocation15], %s78
      %s81 = sshll.u32 [#allocation14], 4
      %s82 = int_to_ptr.vmem [resolvable:$true] %s81
      %84 = dma.hbm_to_vmem [thread:$0]  %s5, 16, %s82, [#allocation15]
    $region25: #{tpu_custom_call.1} parent=1 // pred_fallthru
      _
    // Predicated region
    $region26: #{tpu_custom_call.1} parent=1 // pred_check
      _
    $region27: #{tpu_custom_call.1} parent=1 // pred_check_branch
      %86 = sbr.rel (0) target = $region29
    $region28: #{tpu_custom_call.1} parent=1 // pred_region
      %s88 = ssub.s32 2048, 2048
      %89 = vsyncadd [#allocation15], %s88
      %s90 = sshll.u32 [#allocation16], 4
      %s91 = int_to_ptr.vmem [resolvable:$true] %s90
      %96 = dma.hbm_to_vmem [thread:$0]  %s6, 2048, %s91, [#allocation15], 128, 128, 8
    $region29: #{tpu_custom_call.1} parent=1 // pred_fallthru
      _
    // Predicated region
    $region30: #{tpu_custom_call.1} parent=1 // pred_check
      _
    $region31: #{tpu_custom_call.1} parent=1 // pred_check_branch
      %98 = sbr.rel (0) target = $region33
    $region32: #{tpu_custom_call.1} parent=1 // pred_region
      %s100 = ssub.s32 16, 16
      %101 = vsyncadd [#allocation18], %s100
      %s103 = sshll.u32 [#allocation17], 4
      %s104 = int_to_ptr.vmem [resolvable:$true] %s103
      %106 = dma.hbm_to_vmem [thread:$0]  %s7, 16, %s104, [#allocation18]
    $region33: #{tpu_custom_call.1} parent=1 // pred_fallthru
      _
    // Predicated region
    $region34: #{tpu_custom_call.1} parent=1 // pred_check
      _
    $region35: #{tpu_custom_call.1} parent=1 // pred_check_branch
      %108 = sbr.rel (0) target = $region37
    $region36: #{tpu_custom_call.1} parent=1 // pred_region
      %109 = dma.done [#allocation6], 256
    $region37: #{tpu_custom_call.1} parent=1 // pred_fallthru
      _
    // Predicated region
    $region38: #{tpu_custom_call.1} parent=1 // pred_check
      _
    $region39: #{tpu_custom_call.1} parent=1 // pred_check_branch
      %111 = sbr.rel (0) target = $region41
    $region40: #{tpu_custom_call.1} parent=1 // pred_region
      %112 = dma.done [#allocation9], 32
    $region41: #{tpu_custom_call.1} parent=1 // pred_fallthru
      _
    // Predicated region
    $region42: #{tpu_custom_call.1} parent=1 // pred_check
      _
    $region43: #{tpu_custom_call.1} parent=1 // pred_check_branch
      %114 = sbr.rel (0) target = $region45
    $region44: #{tpu_custom_call.1} parent=1 // pred_region
      %115 = dma.done [#allocation9], 2048
    $region45: #{tpu_custom_call.1} parent=1 // pred_fallthru
      _
    // Predicated region
    $region46: #{tpu_custom_call.1} parent=1 // pred_check
      _
    $region47: #{tpu_custom_call.1} parent=1 // pred_check_branch
      %117 = sbr.rel (0) target = $region49
    $region48: #{tpu_custom_call.1} parent=1 // pred_region
      %118 = dma.done [#allocation12], 16
    $region49: #{tpu_custom_call.1} parent=1 // pred_fallthru
      _
    // Predicated region
    $region50: #{tpu_custom_call.1} parent=1 // pred_check
      _
    $region51: #{tpu_custom_call.1} parent=1 // pred_check_branch
      %120 = sbr.rel (0) target = $region53
    $region52: #{tpu_custom_call.1} parent=1 // pred_region
      %121 = dma.done [#allocation12], 2048
    $region53: #{tpu_custom_call.1} parent=1 // pred_fallthru
      _
    // Predicated region
    $region54: #{tpu_custom_call.1} parent=1 // pred_check
      _
    $region55: #{tpu_custom_call.1} parent=1 // pred_check_branch
      %123 = sbr.rel (0) target = $region57
    $region56: #{tpu_custom_call.1} parent=1 // pred_region
      %124 = dma.done [#allocation15], 16
    $region57: #{tpu_custom_call.1} parent=1 // pred_fallthru
      _
    // Predicated region
    $region58: #{tpu_custom_call.1} parent=1 // pred_check
      _
    $region59: #{tpu_custom_call.1} parent=1 // pred_check_branch
      %126 = sbr.rel (0) target = $region61
    $region60: #{tpu_custom_call.1} parent=1 // pred_region
      %127 = dma.done [#allocation15], 2048
    $region61: #{tpu_custom_call.1} parent=1 // pred_fallthru
      _
    // Predicated region
    $region62: #{tpu_custom_call.1} parent=1 // pred_check
      _
    $region63: #{tpu_custom_call.1} parent=1 // pred_check_branch
      %129 = sbr.rel (0) target = $region65
    $region64: #{tpu_custom_call.1} parent=1 // pred_region
      %130 = dma.done [#allocation18], 16
    $region65: #{tpu_custom_call.1} parent=1 // pred_fallthru
      _
    %p131 = scmp.eq.s32.totalorder 0, 0
    // Predicated region
    $region66: #{tpu_custom_call.1} parent=1 // pred_check
      %p132 = pneg %p131
    $region67: #{tpu_custom_call.1} parent=1 // pred_check_branch
      %134 = sbr.rel (%p132) target = $region69
    $region68: #{tpu_custom_call.1} parent=1 // pred_region
      %135 = vst [vmem:[#allocation2] sm:$0x3] -1e+30
      %136 = vst [vmem:[#allocation3] sm:$0x3] 0.0
      %137 = vst [vmem:[#allocation4] sm:$0x3] 0.0
    $region69: #{tpu_custom_call.1} parent=1 // pred_fallthru
      _
    %v138 = vld [vmem:[#allocation5] sm:$0xff]
    %v139 = vld [vmem:[#allocation5 + $0x8] sm:$0xff]
    %v140 = vld [vmem:[#allocation10] sm:$0xff]
    %v141 = vld [vmem:[#allocation10 + $0x8] sm:$0xff]
    %v142 = vld [vmem:[#allocation10 + $0x10] sm:$0xff]
    %v143 = vld [vmem:[#allocation10 + $0x18] sm:$0xff]
    %v144 = vld [vmem:[#allocation10 + $0x20] sm:$0xff]
    %v145 = vld [vmem:[#allocation10 + $0x28] sm:$0xff]
    %v146 = vld [vmem:[#allocation10 + $0x30] sm:$0xff]
    %v147 = vld [vmem:[#allocation10 + $0x38] sm:$0xff]
    %v148 = vld [vmem:[#allocation10 + $0x40] sm:$0xff]
    %v149 = vld [vmem:[#allocation10 + $0x48] sm:$0xff]
    %v150 = vld [vmem:[#allocation10 + $0x50] sm:$0xff]
    %v151 = vld [vmem:[#allocation10 + $0x58] sm:$0xff]
    %v152 = vld [vmem:[#allocation10 + $0x60] sm:$0xff]
    %v153 = vld [vmem:[#allocation10 + $0x68] sm:$0xff]
    %v154 = vld [vmem:[#allocation10 + $0x70] sm:$0xff]
    %v155 = vld [vmem:[#allocation10 + $0x78] sm:$0xff]
    %v156 = vld [vmem:[#allocation11] sm:$0x1]
    %v158 = vlaneseq
    %v159 = vshrl.u32 %v158, 7
    %v160 = vsub.s32 0, %v159
    %v161 = vrot.slane %v156, %v160
    %163 = vmatprep.subr.mxu0 0.0
    %164 = vmatpush1.msra.mxu0 %v140
    %165 = vmatprep.subr.mxu0 0.0
    %166 = vmatpush1.msra.mxu0 %v141
    %167 = vmatprep.subr.mxu0 0.0
    %168 = vmatpush1.msra.mxu0 %v142
    %169 = vmatprep.subr.mxu0 0.0
    %170 = vmatpush1.msra.mxu0 %v143
    %171 = vmatprep.subr.mxu0 0.0
    %172 = vmatpush1.msra.mxu0 %v144
    %173 = vmatprep.subr.mxu0 0.0
    %174 = vmatpush1.msra.mxu0 %v145
    %175 = vmatprep.subr.mxu0 0.0
    %176 = vmatpush1.msra.mxu0 %v146
    %177 = vmatprep.subr.mxu0 0.0
    %178 = vmatpush1.msra.mxu0 %v147
    %179 = vmatprep.subr.mxu0 0.0
    %180 = vmatpush1.msra.mxu0 %v148
    %181 = vmatprep.subr.mxu0 0.0
    %182 = vmatpush1.msra.mxu0 %v149
    %183 = vmatprep.subr.mxu0 0.0
    %184 = vmatpush1.msra.mxu0 %v150
    %185 = vmatprep.subr.mxu0 0.0
    %186 = vmatpush1.msra.mxu0 %v151
    %187 = vmatprep.subr.mxu0 0.0
    %188 = vmatpush1.msra.mxu0 %v152
    %189 = vmatprep.subr.mxu0 0.0
    %190 = vmatpush1.msra.mxu0 %v153
    %191 = vmatprep.subr.mxu0 0.0
    %192 = vmatpush1.msra.mxu0 %v154
    %193 = vmatprep.subr.mxu0 0.0
    %194 = vmatpush1.msra.mxu0 %v155
    %195 = vmatprep.subr.mxu0 0.0
    %196 = vmatpush1.msra.mxu0 0.0
    %197 = vmatprep.subr.mxu0 0.0
    %198 = vmatpush1.msra.mxu0 0.0
    %199 = vmatprep.subr.mxu0 0.0
    %200 = vmatpush1.msra.mxu0 0.0
    %201 = vmatprep.subr.mxu0 0.0
    %202 = vmatpush1.msra.mxu0 0.0
    %203 = vmatprep.subr.mxu0 0.0
    %204 = vmatpush1.msra.mxu0 0.0
    %205 = vmatprep.subr.mxu0 0.0
    %206 = vmatpush1.msra.mxu0 0.0
    %207 = vmatprep.subr.mxu0 0.0
    %208 = vmatpush1.msra.mxu0 0.0
    %209 = vmatprep.subr.mxu0 0.0
    %210 = vmatpush1.msra.mxu0 0.0
    %211 = vmatprep.subr.mxu0 0.0
    %212 = vmatpush1.msra.mxu0 0.0
    %213 = vmatprep.subr.mxu0 0.0
    %214 = vmatpush1.msra.mxu0 0.0
    %215 = vmatprep.subr.mxu0 0.0
    %216 = vmatpush1.msra.mxu0 0.0
    %217 = vmatprep.subr.mxu0 0.0
    %218 = vmatpush1.msra.mxu0 0.0
    %219 = vmatprep.subr.mxu0 0.0
    %220 = vmatpush1.msra.mxu0 0.0
    %221 = vmatprep.subr.mxu0 0.0
    %222 = vmatpush1.msra.mxu0 0.0
    %223 = vmatprep.subr.mxu0 0.0
    %224 = vmatpush1.msra.mxu0 0.0
    %225 = vmatprep.subr.mxu0 0.0
    %226 = vmatpush1.msra.mxu0 0.0
    %227 = vmatprep.mubr.f32.mxu0 0.0
    %228 = vmatmul.mubr.f32.gmra.mrb[0].mxu0 %v138
    %v229 = vpop.f32.mrb[0].mxu0
    %v230 = vadd.f32 %v161, %v229
    %v231 = vpop.f32.mrb[0].mxu0
    %232 = vmatprep.mubr.f32.mxu0 0.0
    %233 = vmatmul.mubr.f32.gmra.mrb[0].mxu0 %v139
    %v234 = vpop.f32.mrb[0].mxu0
    %v235 = vadd.f32 %v161, %v234
    %v236 = vpop.f32.mrb[0].mxu0
    %237 = vdwg.mxu0
    %v238 = vld [vmem:[#allocation13] sm:$0xff]
    %v239 = vld [vmem:[#allocation13 + $0x8] sm:$0xff]
    %v240 = vld [vmem:[#allocation13 + $0x10] sm:$0xff]
    %v241 = vld [vmem:[#allocation13 + $0x18] sm:$0xff]
    %v242 = vld [vmem:[#allocation13 + $0x20] sm:$0xff]
    %v243 = vld [vmem:[#allocation13 + $0x28] sm:$0xff]
    %v244 = vld [vmem:[#allocation13 + $0x30] sm:$0xff]
    %v245 = vld [vmem:[#allocation13 + $0x38] sm:$0xff]
    %v246 = vld [vmem:[#allocation13 + $0x40] sm:$0xff]
    %v247 = vld [vmem:[#allocation13 + $0x48] sm:$0xff]
    %v248 = vld [vmem:[#allocation13 + $0x50] sm:$0xff]
    %v249 = vld [vmem:[#allocation13 + $0x58] sm:$0xff]
    %v250 = vld [vmem:[#allocation13 + $0x60] sm:$0xff]
    %v251 = vld [vmem:[#allocation13 + $0x68] sm:$0xff]
    %v252 = vld [vmem:[#allocation13 + $0x70] sm:$0xff]
    %v253 = vld [vmem:[#allocation13 + $0x78] sm:$0xff]
    %v254 = vld [vmem:[#allocation14] sm:$0x1]
    %v256 = vlaneseq
    %v257 = vshrl.u32 %v256, 7
    %v258 = vsub.s32 0, %v257
    %v259 = vrot.slane %v254, %v258
    %261 = vmatprep.subr.mxu0 0.0
    %262 = vmatpush1.msra.mxu0 %v238
    %263 = vmatprep.subr.mxu0 0.0
    %264 = vmatpush1.msra.mxu0 %v239
    %265 = vmatprep.subr.mxu0 0.0
    %266 = vmatpush1.msra.mxu0 %v240
    %267 = vmatprep.subr.mxu0 0.0
    %268 = vmatpush1.msra.mxu0 %v241
    %269 = vmatprep.subr.mxu0 0.0
    %270 = vmatpush1.msra.mxu0 %v242
    %271 = vmatprep.subr.mxu0 0.0
    %272 = vmatpush1.msra.mxu0 %v243
    %273 = vmatprep.subr.mxu0 0.0
    %274 = vmatpush1.msra.mxu0 %v244
    %275 = vmatprep.subr.mxu0 0.0
    %276 = vmatpush1.msra.mxu0 %v245
    %277 = vmatprep.subr.mxu0 0.0
    %278 = vmatpush1.msra.mxu0 %v246
    %279 = vmatprep.subr.mxu0 0.0
    %280 = vmatpush1.msra.mxu0 %v247
    %281 = vmatprep.subr.mxu0 0.0
    %282 = vmatpush1.msra.mxu0 %v248
    %283 = vmatprep.subr.mxu0 0.0
    %284 = vmatpush1.msra.mxu0 %v249
    %285 = vmatprep.subr.mxu0 0.0
    %286 = vmatpush1.msra.mxu0 %v250
    %287 = vmatprep.subr.mxu0 0.0
    %288 = vmatpush1.msra.mxu0 %v251
    %289 = vmatprep.subr.mxu0 0.0
    %290 = vmatpush1.msra.mxu0 %v252
    %291 = vmatprep.subr.mxu0 0.0
    %292 = vmatpush1.msra.mxu0 %v253
    %293 = vmatprep.subr.mxu0 0.0
    %294 = vmatpush1.msra.mxu0 0.0
    %295 = vmatprep.subr.mxu0 0.0
    %296 = vmatpush1.msra.mxu0 0.0
    %297 = vmatprep.subr.mxu0 0.0
    %298 = vmatpush1.msra.mxu0 0.0
    %299 = vmatprep.subr.mxu0 0.0
    %300 = vmatpush1.msra.mxu0 0.0
    %301 = vmatprep.subr.mxu0 0.0
    %302 = vmatpush1.msra.mxu0 0.0
    %303 = vmatprep.subr.mxu0 0.0
    %304 = vmatpush1.msra.mxu0 0.0
    %305 = vmatprep.subr.mxu0 0.0
    %306 = vmatpush1.msra.mxu0 0.0
    %307 = vmatprep.subr.mxu0 0.0
    %308 = vmatpush1.msra.mxu0 0.0
    %309 = vmatprep.subr.mxu0 0.0
    %310 = vmatpush1.msra.mxu0 0.0
    %311 = vmatprep.subr.mxu0 0.0
    %312 = vmatpush1.msra.mxu0 0.0
    %313 = vmatprep.subr.mxu0 0.0
    %314 = vmatpush1.msra.mxu0 0.0
    %315 = vmatprep.subr.mxu0 0.0
    %316 = vmatpush1.msra.mxu0 0.0
    %317 = vmatprep.subr.mxu0 0.0
    %318 = vmatpush1.msra.mxu0 0.0
    %319 = vmatprep.subr.mxu0 0.0
    %320 = vmatpush1.msra.mxu0 0.0
    %321 = vmatprep.subr.mxu0 0.0
    %322 = vmatpush1.msra.mxu0 0.0
    %323 = vmatprep.subr.mxu0 0.0
    %324 = vmatpush1.msra.mxu0 0.0
    %325 = vmatprep.mubr.f32.mxu0 0.0
    %326 = vmatmul.mubr.f32.gmra.mrb[0].mxu0 %v230
    %v327 = vpop.f32.mrb[0].mxu0
    %v328 = vadd.f32 %v259, %v327
    %v329 = vpop.f32.mrb[0].mxu0
    %330 = vmatprep.mubr.f32.mxu0 0.0
    %331 = vmatmul.mubr.f32.gmra.mrb[0].mxu0 %v235
    %v332 = vpop.f32.mrb[0].mxu0
    %v333 = vadd.f32 %v259, %v332
    %v334 = vpop.f32.mrb[0].mxu0
    %335 = vdwg.mxu0
    %v336 = vmax.f32 %v328, 0.0
    %v337 = vmax.f32 %v333, 0.0
    %v338 = vld [vmem:[#allocation16] sm:$0xff]
    %v339 = vld [vmem:[#allocation16 + $0x8] sm:$0xff]
    %v340 = vld [vmem:[#allocation16 + $0x10] sm:$0xff]
    %v341 = vld [vmem:[#allocation16 + $0x18] sm:$0xff]
    %v342 = vld [vmem:[#allocation16 + $0x20] sm:$0xff]
    %v343 = vld [vmem:[#allocation16 + $0x28] sm:$0xff]
    %v344 = vld [vmem:[#allocation16 + $0x30] sm:$0xff]
    %v345 = vld [vmem:[#allocation16 + $0x38] sm:$0xff]
    %v346 = vld [vmem:[#allocation16 + $0x40] sm:$0xff]
    %v347 = vld [vmem:[#allocation16 + $0x48] sm:$0xff]
    %v348 = vld [vmem:[#allocation16 + $0x50] sm:$0xff]
    %v349 = vld [vmem:[#allocation16 + $0x58] sm:$0xff]
    %v350 = vld [vmem:[#allocation16 + $0x60] sm:$0xff]
    %v351 = vld [vmem:[#allocation16 + $0x68] sm:$0xff]
    %v352 = vld [vmem:[#allocation16 + $0x70] sm:$0xff]
    %v353 = vld [vmem:[#allocation16 + $0x78] sm:$0xff]
    %v354 = vld [vmem:[#allocation17] sm:$0x1]
    %v356 = vlaneseq
    %v357 = vshrl.u32 %v356, 7
    %v358 = vsub.s32 0, %v357
    %v359 = vrot.slane %v354, %v358
    %361 = vmatprep.subr.mxu0 0.0
    %362 = vmatpush1.msra.mxu0 %v338
    %363 = vmatprep.subr.mxu0 0.0
    %364 = vmatpush1.msra.mxu0 %v339
    %365 = vmatprep.subr.mxu0 0.0
    %366 = vmatpush1.msra.mxu0 %v340
    %367 = vmatprep.subr.mxu0 0.0
    %368 = vmatpush1.msra.mxu0 %v341
    %369 = vmatprep.subr.mxu0 0.0
    %370 = vmatpush1.msra.mxu0 %v342
    %371 = vmatprep.subr.mxu0 0.0
    %372 = vmatpush1.msra.mxu0 %v343
    %373 = vmatprep.subr.mxu0 0.0
    %374 = vmatpush1.msra.mxu0 %v344
    %375 = vmatprep.subr.mxu0 0.0
    %376 = vmatpush1.msra.mxu0 %v345
    %377 = vmatprep.subr.mxu0 0.0
    %378 = vmatpush1.msra.mxu0 %v346
    %379 = vmatprep.subr.mxu0 0.0
    %380 = vmatpush1.msra.mxu0 %v347
    %381 = vmatprep.subr.mxu0 0.0
    %382 = vmatpush1.msra.mxu0 %v348
    %383 = vmatprep.subr.mxu0 0.0
    %384 = vmatpush1.msra.mxu0 %v349
    %385 = vmatprep.subr.mxu0 0.0
    %386 = vmatpush1.msra.mxu0 %v350
    %387 = vmatprep.subr.mxu0 0.0
    %388 = vmatpush1.msra.mxu0 %v351
    %389 = vmatprep.subr.mxu0 0.0
    %390 = vmatpush1.msra.mxu0 %v352
    %391 = vmatprep.subr.mxu0 0.0
    %392 = vmatpush1.msra.mxu0 %v353
    %393 = vmatprep.subr.mxu0 0.0
    %394 = vmatpush1.msra.mxu0 0.0
    %395 = vmatprep.subr.mxu0 0.0
    %396 = vmatpush1.msra.mxu0 0.0
    %397 = vmatprep.subr.mxu0 0.0
    %398 = vmatpush1.msra.mxu0 0.0
    %399 = vmatprep.subr.mxu0 0.0
    %400 = vmatpush1.msra.mxu0 0.0
    %401 = vmatprep.subr.mxu0 0.0
    %402 = vmatpush1.msra.mxu0 0.0
    %403 = vmatprep.subr.mxu0 0.0
    %404 = vmatpush1.msra.mxu0 0.0
    %405 = vmatprep.subr.mxu0 0.0
    %406 = vmatpush1.msra.mxu0 0.0
    %407 = vmatprep.subr.mxu0 0.0
    %408 = vmatpush1.msra.mxu0 0.0
    %409 = vmatprep.subr.mxu0 0.0
    %410 = vmatpush1.msra.mxu0 0.0
    %411 = vmatprep.subr.mxu0 0.0
    %412 = vmatpush1.msra.mxu0 0.0
    %413 = vmatprep.subr.mxu0 0.0
    %414 = vmatpush1.msra.mxu0 0.0
    %415 = vmatprep.subr.mxu0 0.0
    %416 = vmatpush1.msra.mxu0 0.0
    %417 = vmatprep.subr.mxu0 0.0
    %418 = vmatpush1.msra.mxu0 0.0
    %419 = vmatprep.subr.mxu0 0.0
    %420 = vmatpush1.msra.mxu0 0.0
    %421 = vmatprep.subr.mxu0 0.0
    %422 = vmatpush1.msra.mxu0 0.0
    %423 = vmatprep.subr.mxu0 0.0
    %424 = vmatpush1.msra.mxu0 0.0
    %425 = vmatprep.mubr.f32.mxu0 0.0
    %426 = vmatmul.mubr.f32.gmra.mrb[0].mxu0 %v336
    %v427 = vpop.f32.mrb[0].mxu0
    %v428 = vadd.f32 %v359, %v427
    %v429 = vpop.f32.mrb[0].mxu0
    %430 = vmatprep.mubr.f32.mxu0 0.0
    %431 = vmatmul.mubr.f32.gmra.mrb[0].mxu0 %v337
    %v432 = vpop.f32.mrb[0].mxu0
    %v433 = vadd.f32 %v359, %v432
    %v434 = vpop.f32.mrb[0].mxu0
    %435 = vdwg.mxu0
    %v436 = vld [vmem:[#allocation8] sm:$0x3]
    %v437 = vlaneseq
    %v438 = vshrl.u32 %v437, 7
    %v439 = vsub.s32 0, %v438
    %v440 = vrot.slane %v436, %v439
    %442 = vbcast.lane.b32.xlu0 %v440, 256
    %v443 = vpop.permute.xlu0 %442
    %v444 = vlaneseq
    %v445 = vshrl.u32 %v444, 7
    %v446 = vsub.s32 1, %v445
    %v447 = vrot.slane %v436, %v446
    %449 = vbcast.lane.b32.xlu0 %v447, 256
    %v450 = vpop.permute.xlu0 %449
    %v451 = vadd.f32 %v428, %v443
    %v452 = vadd.f32 %v433, %v450
    %v453 = vld [vmem:[#allocation2] sm:$0x3]
    %v454 = vrot.slane %v451, 4
    %v455 = vmax.f32 %v451, %v454
    %v456 = vrot.slane %v455, 2
    %v457 = vmax.f32 %v455, %v456
    %v458 = vrot.slane %v457, 1
    %v459 = vmax.f32 %v457, %v458
    %v460 = vrot.slane %v452, 4
    %v461 = vmax.f32 %v452, %v460
    %v462 = vrot.slane %v461, 2
    %v463 = vmax.f32 %v461, %v462
    %v464 = vrot.slane %v463, 1
    %v465 = vmax.f32 %v463, %v464
    %vm468 = vcmask 1041409
    %v469 = vsel %vm468, %v465, %v459
    %v471 = vmax.f32 %v453, %v469
    %v472 = vsub.f32 %v453, %v471
    %v473 = vmul.f32 %v472, 1.442695
    %v474 = vpow.pop %v473
    %v477 = vunpack.c.l.s4 1966171168
    %v478 = vunpack.c.0.s8 %v477
    %v479 = vlaneseq
    %v480 = vshrl.u32 %v479, 7
    %v481 = vsub.s32 %v478, %v480
    %v482 = vrot.slane %v471, %v481
    %v483 = vcombine.high %v482, %v482
    %v485 = vunpack.c.l.s4 1966171168
    %v486 = vunpack.c.0.s8 %v485
    %v487 = vlaneseq
    %v488 = vshrl.u32 %v487, 7
    %v489 = vsub.s32 %v486, %v488
    %v490 = vrot.slane %v482, %v489
    %v492 = vunpack.c.l.s4 1966171168
    %v493 = vunpack.c.0.s8 %v492
    %v494 = vlaneseq
    %v495 = vshrl.u32 %v494, 7
    %v496 = vsub.s32 %v493, %v495
    %v497 = vrot.slane %v483, %v496
    %v498 = vlaneseq
    %v499 = vshrl.u32 %v498, 7
    %v500 = vsub.s32 0, %v499
    %v501 = vrot.slane %v490, %v500
    %v502 = vlaneseq
    %v503 = vshrl.u32 %v502, 7
    %v504 = vsub.s32 0, %v503
    %v505 = vrot.slane %v497, %v504
    %v508 = vsub.f32 %v451, %v501
    %v509 = vsub.f32 %v452, %v505
    %v510 = vmul.f32 %v508, 1.442695
    %v511 = vpow.pop %v510
    %v512 = vmul.f32 %v509, 1.442695
    %v513 = vpow.pop %v512
    %v514 = vld [vmem:[#allocation3] sm:$0x3]
    %v515 = vmul.f32 %v474, %v514
    %v516 = vrot.slane %v511, 4
    %v517 = vadd.f32 %v511, %v516
    %v518 = vrot.slane %v517, 2
    %v519 = vadd.f32 %v517, %v518
    %v520 = vrot.slane %v519, 1
    %v521 = vadd.f32 %v519, %v520
    %v522 = vrot.slane %v513, 4
    %v523 = vadd.f32 %v513, %v522
    %v524 = vrot.slane %v523, 2
    %v525 = vadd.f32 %v523, %v524
    %v526 = vrot.slane %v525, 1
    %v527 = vadd.f32 %v525, %v526
    %v530 = vsel %vm468, %v527, %v521
    %v532 = vadd.f32 %v515, %v530
    %533 = vst [vmem:[#allocation3] sm:$0x3] %v532
    %v534 = vld [vmem:[#allocation4] sm:$0x3]
    %v535 = vmul.f32 %v474, %v534
    %v536 = vmul.f32 %v230, %v511
    %v537 = vmul.f32 %v235, %v513
    %v538 = vrot.slane %v536, 4
    %v539 = vadd.f32 %v536, %v538
    %v540 = vrot.slane %v539, 2
    %v541 = vadd.f32 %v539, %v540
    %v542 = vrot.slane %v541, 1
    %v543 = vadd.f32 %v541, %v542
    %v544 = vrot.slane %v537, 4
    %v545 = vadd.f32 %v537, %v544
    %v546 = vrot.slane %v545, 2
    %v547 = vadd.f32 %v545, %v546
    %v548 = vrot.slane %v547, 1
    %v549 = vadd.f32 %v547, %v548
    %v552 = vsel %vm468, %v549, %v543
    %v554 = vadd.f32 %v535, %v552
    %555 = vst [vmem:[#allocation4] sm:$0x3] %v554
    %556 = vst [vmem:[#allocation2] sm:$0x3] %v471
    // Predicated region
    $region70: #{tpu_custom_call.1} parent=1 // pred_check
      %p557 = pneg %p131
    $region71: #{tpu_custom_call.1} parent=1 // pred_check_branch
      %559 = sbr.rel (%p557) target = $region73
    $region72: #{tpu_custom_call.1} parent=1 // pred_region
      %v560 = vld [vmem:[#allocation4] sm:$0x3]
      %v561 = vld [vmem:[#allocation3] sm:$0x3]
      %v562 = vrcp.pop %v561
      %v563 = vmul.f32 %v560, %v562
      %564 = vst [vmem:[#allocation19] sm:$0x3] %v563
    $region73: #{tpu_custom_call.1} parent=1 // pred_fallthru
      _
    // Predicated region
    $region74: #{tpu_custom_call.1} parent=1 // pred_check
      _
    $region75: #{tpu_custom_call.1} parent=1 // pred_check_branch
      %566 = sbr.rel (0) target = $region77
    $region76: #{tpu_custom_call.1} parent=1 // pred_region
      %s568 = ssub.s32 32, 32
      %569 = vsyncadd [#allocation7], %s568
      %s571 = sshll.u32 [#allocation19], 4
      %s572 = int_to_ptr.vmem [resolvable:$true] %s571
      %574 = dma.vmem_to_hbm [thread:$0]  %s572, 32, %s8, [#allocation7]
    $region77: #{tpu_custom_call.1} parent=1 // pred_fallthru
      _
    // Predicated region
    $region78: #{tpu_custom_call.1} parent=1 // pred_check
      _
    $region79: #{tpu_custom_call.1} parent=1 // pred_check_branch
      %576 = sbr.rel (0) target = $region81
    $region80: #{tpu_custom_call.1} parent=1 // pred_region
      %577 = dma.done [#allocation7], 32
    $region81: #{tpu_custom_call.1} parent=1 // pred_fallthru
      _
    %578 = vsyncpa [#allocation6], 1
    %579 = vsyncpa [#allocation9], 1
    %580 = vsyncpa [#allocation12], 1
    %581 = vsyncpa [#allocation15], 1
    %582 = vsyncpa [#allocation18], 1
    %583 = vsyncpa [#allocation7], 1

</llo_original>
